<compile_context>
chip_gen: v7x
topology: tpu7x:2x2x1
jax: 0.10.0
libtpu: 0.0.40
codegen_flags: <defaults>
</compile_context>

<pallas_src>
import functools

import jax
import jax.numpy as jnp
from jax import lax
from jax.experimental import pallas as pl
from jax.experimental.pallas import tpu as pltpu


def _headwise_rmsnorm_kernel(x_ref, seg_ref, wseg_ref, o_ref, *, eps, d_head):
    # x_ref   : (TN, H*D) lane-dense tile of tokens (all heads concatenated).
    # seg_ref : (H*D, Hp) 0/1 selector; column h is 1 on head h's D lanes.
    # wseg_ref: (Hp, H*D) row h holds weight[h, :] on head h's lanes, 0 elsewhere.
    xf = x_ref[...].astype(jnp.float32)                       # (TN, HD)

    # Per-head sum of squares via the idle MXU -> (TN, Hp).
    ss = jnp.dot(xf * xf, seg_ref[...],
                 preferred_element_type=jnp.float32,
                 precision=lax.Precision.HIGHEST)
    inv = lax.rsqrt(ss * (1.0 / d_head) + eps)                # (TN, Hp), EUP rsqrt

    # Broadcast per-head scale back to lanes with the head-wise weight folded
    # into the selector (values are exact 0/weight, so this is just a gather
    # done on the MXU) -> (TN, HD).
    scale = jnp.dot(inv, wseg_ref[...],
                    preferred_element_type=jnp.float32,
                    precision=lax.Precision.HIGHEST)

    o_ref[...] = (xf * scale).astype(o_ref.dtype)


def _choose_tile_n(n_rows, hd):
    # ~2 MiB f32 working block per grid step; multiple of 8 sublanes; capped at
    # 1024 rows and at the (8-rounded) row count so tiny inputs stay one block.
    t = (2 * 1024 * 1024) // (hd * 4)
    t = max(8, min(1024, (t // 8) * 8))
    t = min(t, ((n_rows + 7) // 8) * 8)
    return max(t, 8)


def headwise_rmsnorm(x, weight, *, eps=1e-5, tile_n=None):
    """x: (B, L, H, D); weight: (H, D). Returns (B, L, H, D)."""
    B, L, H, D = x.shape
    N = B * L
    HD = H * D

    # Lane-dense 2-D view (free reshape of a contiguous array — no HBM copy,
    # unlike the old jnp.pad path).
    x2d = x.reshape(N, HD)

    # Head-selector matrices, built once in the wrapper; resident in VMEM
    # across all grid steps (constant index_map).
    Hp = ((H + 7) // 8) * 8                                    # sublane-pad heads
    head_of_lane = jnp.arange(HD, dtype=jnp.int32) // D        # (HD,)
    onehot_t = (jnp.arange(Hp, dtype=jnp.int32)[:, None]
                == head_of_lane[None, :]).astype(jnp.float32)  # (Hp, HD)
    seg = onehot_t.T                                           # (HD, Hp)
    wseg_t = onehot_t * weight.reshape(1, HD).astype(jnp.float32)  # (Hp, HD)

    if tile_n is None:
        tile_n = _choose_tile_n(N, HD)
    grid = (pl.cdiv(N, tile_n),)   # no padding: final block is partial, masked

    out2d = pl.pallas_call(
        functools.partial(_headwise_rmsnorm_kernel, eps=eps, d_head=D),
        out_shape=jax.ShapeDtypeStruct((N, HD), x.dtype),
        grid_spec=pltpu.PrefetchScalarGridSpec(
            num_scalar_prefetch=0,
            grid=grid,
            in_specs=[
                # token tile: (tile_n, HD); lane dim equals the full array dim
                pl.BlockSpec((tile_n, HD), lambda i: (i, 0)),
                # selector / weighted selector: full arrays, constant index map
                # (DMA'd once and kept resident across the grid)
                pl.BlockSpec((HD, Hp), lambda i: (0, 0)),
                pl.BlockSpec((Hp, HD), lambda i: (0, 0)),
            ],
            out_specs=pl.BlockSpec((tile_n, HD), lambda i: (i, 0)),
        ),
        compiler_params=pltpu.CompilerParams(
            dimension_semantics=("parallel",),          # megacore sharding on v7x
            vmem_limit_bytes=32 * 1024 * 1024,          # safe on v5e/v6e/v7x
        ),
    )(x2d, seg, wseg_t)

    return out2d.reshape(B, L, H, D)


def _reference(x, weight, eps=1e-5):
    xf = x.astype(jnp.float32)
    ms = jnp.mean(xf * xf, axis=-1, keepdims=True)
    y = xf * lax.rsqrt(ms + eps) * weight.astype(jnp.float32)[None, None]
    return y.astype(x.dtype)


if __name__ == "__main__":
    key = jax.random.PRNGKey(0)
    kx, kw, kx2 = jax.random.split(key, 3)

    # Primary test: small module-consistent shape.
    B, L, H, D = 2, 8, 4, 32
    x = jax.random.normal(kx, (B, L, H, D), dtype=jnp.float32)
    # Module __init__ sets weight = ones(n_heads, d_head); perturb it so the
    # head-wise broadcast is actually exercised.
    weight = jnp.ones((H, D), dtype=jnp.float32) + 0.1 * jax.random.normal(
        kw, (H, D), dtype=jnp.float32
    )

    out = jax.block_until_ready(headwise_rmsnorm(x, weight, eps=1e-5))
    ref = _reference(x, weight, eps=1e-5)
    assert out.shape == (B, L, H, D)
    assert jnp.allclose(out, ref, atol=1e-5, rtol=1e-5)

    # Second test: token count not a multiple of the tile -> exercises the
    # padding-free partial final block (replaces the old jnp.pad/slice glue).
    B2, L2 = 2, 13
    x2 = jax.random.normal(kx2, (B2, L2, H, D), dtype=jnp.float32)
    out2 = jax.block_until_ready(headwise_rmsnorm(x2, weight, eps=1e-5, tile_n=16))
    ref2 = _reference(x2, weight, eps=1e-5)
    assert out2.shape == (B2, L2, H, D)
    assert jnp.allclose(out2, ref2, atol=1e-5, rtol=1e-5)

    print("KERNEL_OK")
</pallas_src>

<mosaic_0001>
module attributes {stable_mosaic.version = 11 : i64} {
  func.func @_headwise_rmsnorm_kernel(%arg0: i32, %arg1: memref<16x128xf32, #tpu.memory_space<vmem>>, %arg2: memref<128x8xf32, #tpu.memory_space<vmem>>, %arg3: memref<8x128xf32, #tpu.memory_space<vmem>>, %arg4: memref<16x128xf32, #tpu.memory_space<vmem>>) attributes {dimension_semantics = [#tpu.dimension_semantics<parallel>], iteration_bounds = array<i64: 1>, scalar_prefetch = 0 : i64, scratch_operands = 0 : i64, tpu.core_type = #tpu.core_type<tc>, window_params = [{transform_indices = @transform_0, window_bounds = array<i64: 16, 128>}, {pipeline_mode = #tpu.pipeline_mode<synchronous>, transform_indices = @transform_1, window_bounds = array<i64: 128, 8>}, {pipeline_mode = #tpu.pipeline_mode<synchronous>, transform_indices = @transform_2, window_bounds = array<i64: 8, 128>}, {transform_indices = @transform_3, window_bounds = array<i64: 16, 128>}]} {
    %c0 = arith.constant 0 : index
    %c0_0 = arith.constant 0 : index
    %0 = vector.load %arg1[%c0, %c0_0] : memref<16x128xf32, #tpu.memory_space<vmem>>, vector<16x128xf32>
    %1 = arith.mulf %0, %0 : vector<16x128xf32>
    %c0_1 = arith.constant 0 : index
    %c0_2 = arith.constant 0 : index
    %2 = vector.load %arg2[%c0_1, %c0_2] : memref<128x8xf32, #tpu.memory_space<vmem>>, vector<128x8xf32>
    %cst = arith.constant dense<0.000000e+00> : vector<16x8xf32>
    %3 = tpu.matmul %1, %2, %cst {dimension_numbers = #tpu.dot_dimension_numbers<[1], [0], [0], [1], [0, 0, 1, 1], [], []>, precision = #tpu.contract_precision<fp32>} : vector<16x128xf32>, vector<128x8xf32>, vector<16x8xf32> -> vector<16x8xf32>
    %cst_3 = arith.constant 3.125000e-02 : f32
    %4 = vector.broadcast %cst_3 : f32 to vector<16x8xf32>
    %5 = arith.mulf %3, %4 : vector<16x8xf32>
    %cst_4 = arith.constant 9.99999974E-6 : f32
    %6 = vector.broadcast %cst_4 : f32 to vector<16x8xf32>
    %7 = arith.addf %5, %6 : vector<16x8xf32>
    %8 = math.rsqrt %7 : vector<16x8xf32>
    %c0_5 = arith.constant 0 : index
    %c0_6 = arith.constant 0 : index
    %9 = vector.load %arg3[%c0_5, %c0_6] : memref<8x128xf32, #tpu.memory_space<vmem>>, vector<8x128xf32>
    %cst_7 = arith.constant dense<0.000000e+00> : vector<16x128xf32>
    %10 = tpu.matmul %8, %9, %cst_7 {dimension_numbers = #tpu.dot_dimension_numbers<[1], [0], [0], [1], [0, 0, 1, 1], [], []>, precision = #tpu.contract_precision<fp32>} : vector<16x8xf32>, vector<8x128xf32>, vector<16x128xf32> -> vector<16x128xf32>
    %11 = arith.mulf %0, %10 : vector<16x128xf32>
    %c0_8 = arith.constant 0 : index
    %c0_9 = arith.constant 0 : index
    %12 = vector.load %arg4[%c0_8, %c0_9] : memref<16x128xf32, #tpu.memory_space<vmem>>, vector<16x128xf32>
    tpu.vector_store %arg4[%c0_8, %c0_9], %11 {strides = array<i32>} : memref<16x128xf32, #tpu.memory_space<vmem>>, vector<16x128xf32>,
    return
  }
  func.func @transform_0(%arg0: i32) -> (i32, i32) {
    %c0_i32 = arith.constant 0 : i32
    %c0_i32_0 = arith.constant 0 : i32
    return %arg0, %c0_i32 : i32, i32
  }
  func.func @transform_1(%arg0: i32) -> (i32, i32) {
    %c0_i32 = arith.constant 0 : i32
    %c0_i32_0 = arith.constant 0 : i32
    %c0_i32_1 = arith.constant 0 : i32
    return %c0_i32, %c0_i32_0 : i32, i32
  }
  func.func @transform_2(%arg0: i32) -> (i32, i32) {
    %c0_i32 = arith.constant 0 : i32
    %c0_i32_0 = arith.constant 0 : i32
    %c0_i32_1 = arith.constant 0 : i32
    return %c0_i32, %c0_i32_0 : i32, i32
  }
  func.func @transform_3(%arg0: i32) -> (i32, i32) {
    %c0_i32 = arith.constant 0 : i32
    %c0_i32_0 = arith.constant 0 : i32
    return %arg0, %c0_i32 : i32, i32
  }
}

</mosaic_0001>

<llo_original>
// kernel: tpu_custom_call.1
$region0: #{tpu_custom_call.1}
  #allocation0 [shape = 'u32[]', space=smem, size = 0x4, offset = 0x4, fixed_abs, tag = 'smem constant byte address 0x4 - core index']
  #allocation1 [shape = 'u32[144,128]{1,0:T(1,128)}', space=vmem, size = 0x12000, scoped, tag = 'internal scratch']
  %s0 = inlined_call_operand.vmem [shape: f32[16,128], index: 0, kind: input, shape index: {}]
  %s1 = inlined_call_operand.vmem [shape: f32[128,8], index: 1, kind: input, shape index: {}]
  %s2 = inlined_call_operand.vmem [shape: f32[8,128], index: 2, kind: input, shape index: {}]
  %s3 = inlined_call_operand.hbm [shape: f32[16,128], index: 3, kind: output, shape index: {}]
  %s4 = sld [smem:[#allocation0]]
  $region22: #{tpu_custom_call.1} parent=0
    _
  %s6 = ssub.s32 1, %s4
  %s7 = scalar_select 0, %s6, %s4
  $region1: #{tpu_custom_call.1} parent=0
    #allocation2 [shape = 'u8[8192]{0}', space=vmem, size = 0x2000, scoped, tag = 'output window, operand 0, single buffered']
    #allocation3 [shape = 's32[1]{0}', space=sflag, size = 0x4, scoped, tag = 'scoped memory for tpu_custom_call.1']
    %8 = vsyncpa [#allocation3], 0
    // Predicated region
    $region2: #{tpu_custom_call.1} parent=1 // pred_check
      _
    $region3: #{tpu_custom_call.1} parent=1 // pred_check_branch
      %10 = sbr.rel (0) target = $region5
    $region4: #{tpu_custom_call.1} parent=1 // pred_region
      _
    $region5: #{tpu_custom_call.1} parent=1 // pred_fallthru
      _
    // Predicated region
    $region6: #{tpu_custom_call.1} parent=1 // pred_check
      _
    $region7: #{tpu_custom_call.1} parent=1 // pred_check_branch
      %12 = sbr.rel (0) target = $region9
    $region8: #{tpu_custom_call.1} parent=1 // pred_region
      _
    $region9: #{tpu_custom_call.1} parent=1 // pred_fallthru
      _
    // Predicated region
    $region10: #{tpu_custom_call.1} parent=1 // pred_check
      _
    $region11: #{tpu_custom_call.1} parent=1 // pred_check_branch
      %14 = sbr.rel (0) target = $region13
    $region12: #{tpu_custom_call.1} parent=1 // pred_region
      _
    $region13: #{tpu_custom_call.1} parent=1 // pred_fallthru
      _
    %v15 = vld [vmem:[%s0] sm:$0xff]
    %v16 = vld [vmem:[%s0 + $0x8] sm:$0xff]
    %v17 = vmul.f32 %v15, %v15
    %v18 = vmul.f32 %v16, %v16
    %v19 = vld [vmem:[%s1] sm:$0xff]
    %v20 = vld [vmem:[%s1 + $0x8] sm:$0xff]
    %v21 = vld [vmem:[%s1 + $0x10] sm:$0xff]
    %v22 = vld [vmem:[%s1 + $0x18] sm:$0xff]
    %v23 = vld [vmem:[%s1 + $0x20] sm:$0xff]
    %v24 = vld [vmem:[%s1 + $0x28] sm:$0xff]
    %v25 = vld [vmem:[%s1 + $0x30] sm:$0xff]
    %v26 = vld [vmem:[%s1 + $0x38] sm:$0xff]
    %v27 = vld [vmem:[%s1 + $0x40] sm:$0xff]
    %v28 = vld [vmem:[%s1 + $0x48] sm:$0xff]
    %v29 = vld [vmem:[%s1 + $0x50] sm:$0xff]
    %v30 = vld [vmem:[%s1 + $0x58] sm:$0xff]
    %v31 = vld [vmem:[%s1 + $0x60] sm:$0xff]
    %v32 = vld [vmem:[%s1 + $0x68] sm:$0xff]
    %v33 = vld [vmem:[%s1 + $0x70] sm:$0xff]
    %v34 = vld [vmem:[%s1 + $0x78] sm:$0xff]
    %35 = vmatprep.subr.mxu0 0.0
    %v36 = vand.u32 %v19, 4294901760
    %37 = vmatpush1.msra.mxu0 %v36
    %38 = vmatprep.subr.mxu0 0.0
    %v39 = vand.u32 %v20, 4294901760
    %40 = vmatpush1.msra.mxu0 %v39
    %41 = vmatprep.subr.mxu0 0.0
    %v42 = vand.u32 %v21, 4294901760
    %43 = vmatpush1.msra.mxu0 %v42
    %44 = vmatprep.subr.mxu0 0.0
    %v45 = vand.u32 %v22, 4294901760
    %46 = vmatpush1.msra.mxu0 %v45
    %47 = vmatprep.subr.mxu0 0.0
    %v48 = vand.u32 %v23, 4294901760
    %49 = vmatpush1.msra.mxu0 %v48
    %50 = vmatprep.subr.mxu0 0.0
    %v51 = vand.u32 %v24, 4294901760
    %52 = vmatpush1.msra.mxu0 %v51
    %53 = vmatprep.subr.mxu0 0.0
    %v54 = vand.u32 %v25, 4294901760
    %55 = vmatpush1.msra.mxu0 %v54
    %56 = vmatprep.subr.mxu0 0.0
    %v57 = vand.u32 %v26, 4294901760
    %58 = vmatpush1.msra.mxu0 %v57
    %59 = vmatprep.subr.mxu0 0.0
    %v60 = vand.u32 %v27, 4294901760
    %61 = vmatpush1.msra.mxu0 %v60
    %62 = vmatprep.subr.mxu0 0.0
    %v63 = vand.u32 %v28, 4294901760
    %64 = vmatpush1.msra.mxu0 %v63
    %65 = vmatprep.subr.mxu0 0.0
    %v66 = vand.u32 %v29, 4294901760
    %67 = vmatpush1.msra.mxu0 %v66
    %68 = vmatprep.subr.mxu0 0.0
    %v69 = vand.u32 %v30, 4294901760
    %70 = vmatpush1.msra.mxu0 %v69
    %71 = vmatprep.subr.mxu0 0.0
    %v72 = vand.u32 %v31, 4294901760
    %73 = vmatpush1.msra.mxu0 %v72
    %74 = vmatprep.subr.mxu0 0.0
    %v75 = vand.u32 %v32, 4294901760
    %76 = vmatpush1.msra.mxu0 %v75
    %77 = vmatprep.subr.mxu0 0.0
    %v78 = vand.u32 %v33, 4294901760
    %79 = vmatpush1.msra.mxu0 %v78
    %80 = vmatprep.subr.mxu0 0.0
    %v81 = vand.u32 %v34, 4294901760
    %82 = vmatpush1.msra.mxu0 %v81
    %83 = vmatprep.subr.mxu0 0.0
    %84 = vmatpush1.msra.mxu0 0.0
    %85 = vmatprep.subr.mxu0 0.0
    %86 = vmatpush1.msra.mxu0 0.0
    %87 = vmatprep.subr.mxu0 0.0
    %88 = vmatpush1.msra.mxu0 0.0
    %89 = vmatprep.subr.mxu0 0.0
    %90 = vmatpush1.msra.mxu0 0.0
    %91 = vmatprep.subr.mxu0 0.0
    %92 = vmatpush1.msra.mxu0 0.0
    %93 = vmatprep.subr.mxu0 0.0
    %94 = vmatpush1.msra.mxu0 0.0
    %95 = vmatprep.subr.mxu0 0.0
    %96 = vmatpush1.msra.mxu0 0.0
    %97 = vmatprep.subr.mxu0 0.0
    %98 = vmatpush1.msra.mxu0 0.0
    %99 = vmatprep.subr.mxu0 0.0
    %100 = vmatpush1.msra.mxu0 0.0
    %101 = vmatprep.subr.mxu0 0.0
    %102 = vmatpush1.msra.mxu0 0.0
    %103 = vmatprep.subr.mxu0 0.0
    %104 = vmatpush1.msra.mxu0 0.0
    %105 = vmatprep.subr.mxu0 0.0
    %106 = vmatpush1.msra.mxu0 0.0
    %107 = vmatprep.subr.mxu0 0.0
    %108 = vmatpush1.msra.mxu0 0.0
    %109 = vmatprep.subr.mxu0 0.0
    %110 = vmatpush1.msra.mxu0 0.0
    %111 = vmatprep.subr.mxu0 0.0
    %112 = vmatpush1.msra.mxu0 0.0
    %113 = vmatprep.subr.mxu0 0.0
    %114 = vmatpush1.msra.mxu0 0.0
    %115 = vmatprep.mubr.f32.mxu0 0.0
    %v116 = vand.u32 %v17, 4294901760
    %v117 = vsub.f32 %v17, %v116
    %v118 = vand.u32 %v117, 4294901760
    %v119 = vsub.f32 %v117, %v118
    %v120 = vand.u32 %v119, 4294901760
    %121 = vmatmul.mubr.f32.gmra.mrb[0].mxu0 %v120
    %v122 = vpop.f32.mrb[0].mxu0
    %v123 = vadd.f32 0.0, %v122
    %v124 = vpop.f32.mrb[0].mxu0
    %125 = vmatprep.mubr.f32.mxu0 0.0
    %v126 = vand.u32 %v18, 4294901760
    %v127 = vsub.f32 %v18, %v126
    %v128 = vand.u32 %v127, 4294901760
    %v129 = vsub.f32 %v127, %v128
    %v130 = vand.u32 %v129, 4294901760
    %131 = vmatmul.mubr.f32.gmra.mrb[0].mxu0 %v130
    %v132 = vpop.f32.mrb[0].mxu0
    %v133 = vadd.f32 0.0, %v132
    %v134 = vpop.f32.mrb[0].mxu0
    %135 = vdwg.mxu0
    %136 = vmatprep.subr.mxu0 0.0
    %v137 = vand.u32 %v19, 4294901760
    %v138 = vsub.f32 %v19, %v137
    %v139 = vand.u32 %v138, 4294901760
    %v140 = vsub.f32 %v138, %v139
    %v141 = vand.u32 %v140, 4294901760
    %142 = vmatpush1.msra.mxu0 %v141
    %143 = vmatprep.subr.mxu0 0.0
    %v144 = vand.u32 %v20, 4294901760
    %v145 = vsub.f32 %v20, %v144
    %v146 = vand.u32 %v145, 4294901760
    %v147 = vsub.f32 %v145, %v146
    %v148 = vand.u32 %v147, 4294901760
    %149 = vmatpush1.msra.mxu0 %v148
    %150 = vmatprep.subr.mxu0 0.0
    %v151 = vand.u32 %v21, 4294901760
    %v152 = vsub.f32 %v21, %v151
    %v153 = vand.u32 %v152, 4294901760
    %v154 = vsub.f32 %v152, %v153
    %v155 = vand.u32 %v154, 4294901760
    %156 = vmatpush1.msra.mxu0 %v155
    %157 = vmatprep.subr.mxu0 0.0
    %v158 = vand.u32 %v22, 4294901760
    %v159 = vsub.f32 %v22, %v158
    %v160 = vand.u32 %v159, 4294901760
    %v161 = vsub.f32 %v159, %v160
    %v162 = vand.u32 %v161, 4294901760
    %163 = vmatpush1.msra.mxu0 %v162
    %164 = vmatprep.subr.mxu0 0.0
    %v165 = vand.u32 %v23, 4294901760
    %v166 = vsub.f32 %v23, %v165
    %v167 = vand.u32 %v166, 4294901760
    %v168 = vsub.f32 %v166, %v167
    %v169 = vand.u32 %v168, 4294901760
    %170 = vmatpush1.msra.mxu0 %v169
    %171 = vmatprep.subr.mxu0 0.0
    %v172 = vand.u32 %v24, 4294901760
    %v173 = vsub.f32 %v24, %v172
    %v174 = vand.u32 %v173, 4294901760
    %v175 = vsub.f32 %v173, %v174
    %v176 = vand.u32 %v175, 4294901760
    %177 = vmatpush1.msra.mxu0 %v176
    %178 = vmatprep.subr.mxu0 0.0
    %v179 = vand.u32 %v25, 4294901760
    %v180 = vsub.f32 %v25, %v179
    %v181 = vand.u32 %v180, 4294901760
    %v182 = vsub.f32 %v180, %v181
    %v183 = vand.u32 %v182, 4294901760
    %184 = vmatpush1.msra.mxu0 %v183
    %185 = vmatprep.subr.mxu0 0.0
    %v186 = vand.u32 %v26, 4294901760
    %v187 = vsub.f32 %v26, %v186
    %v188 = vand.u32 %v187, 4294901760
    %v189 = vsub.f32 %v187, %v188
    %v190 = vand.u32 %v189, 4294901760
    %191 = vmatpush1.msra.mxu0 %v190
    %192 = vmatprep.subr.mxu0 0.0
    %v193 = vand.u32 %v27, 4294901760
    %v194 = vsub.f32 %v27, %v193
    %v195 = vand.u32 %v194, 4294901760
    %v196 = vsub.f32 %v194, %v195
    %v197 = vand.u32 %v196, 4294901760
    %198 = vmatpush1.msra.mxu0 %v197
    %199 = vmatprep.subr.mxu0 0.0
    %v200 = vand.u32 %v28, 4294901760
    %v201 = vsub.f32 %v28, %v200
    %v202 = vand.u32 %v201, 4294901760
    %v203 = vsub.f32 %v201, %v202
    %v204 = vand.u32 %v203, 4294901760
    %205 = vmatpush1.msra.mxu0 %v204
    %206 = vmatprep.subr.mxu0 0.0
    %v207 = vand.u32 %v29, 4294901760
    %v208 = vsub.f32 %v29, %v207
    %v209 = vand.u32 %v208, 4294901760
    %v210 = vsub.f32 %v208, %v209
    %v211 = vand.u32 %v210, 4294901760
    %212 = vmatpush1.msra.mxu0 %v211
    %213 = vmatprep.subr.mxu0 0.0
    %v214 = vand.u32 %v30, 4294901760
    %v215 = vsub.f32 %v30, %v214
    %v216 = vand.u32 %v215, 4294901760
    %v217 = vsub.f32 %v215, %v216
    %v218 = vand.u32 %v217, 4294901760
    %219 = vmatpush1.msra.mxu0 %v218
    %220 = vmatprep.subr.mxu0 0.0
    %v221 = vand.u32 %v31, 4294901760
    %v222 = vsub.f32 %v31, %v221
    %v223 = vand.u32 %v222, 4294901760
    %v224 = vsub.f32 %v222, %v223
    %v225 = vand.u32 %v224, 4294901760
    %226 = vmatpush1.msra.mxu0 %v225
    %227 = vmatprep.subr.mxu0 0.0
    %v228 = vand.u32 %v32, 4294901760
    %v229 = vsub.f32 %v32, %v228
    %v230 = vand.u32 %v229, 4294901760
    %v231 = vsub.f32 %v229, %v230
    %v232 = vand.u32 %v231, 4294901760
    %233 = vmatpush1.msra.mxu0 %v232
    %234 = vmatprep.subr.mxu0 0.0
    %v235 = vand.u32 %v33, 4294901760
    %v236 = vsub.f32 %v33, %v235
    %v237 = vand.u32 %v236, 4294901760
    %v238 = vsub.f32 %v236, %v237
    %v239 = vand.u32 %v238, 4294901760
    %240 = vmatpush1.msra.mxu0 %v239
    %241 = vmatprep.subr.mxu0 0.0
    %v242 = vand.u32 %v34, 4294901760
    %v243 = vsub.f32 %v34, %v242
    %v244 = vand.u32 %v243, 4294901760
    %v245 = vsub.f32 %v243, %v244
    %v246 = vand.u32 %v245, 4294901760
    %247 = vmatpush1.msra.mxu0 %v246
    %248 = vmatprep.subr.mxu0 0.0
    %249 = vmatpush1.msra.mxu0 0.0
    %250 = vmatprep.subr.mxu0 0.0
    %251 = vmatpush1.msra.mxu0 0.0
    %252 = vmatprep.subr.mxu0 0.0
    %253 = vmatpush1.msra.mxu0 0.0
    %254 = vmatprep.subr.mxu0 0.0
    %255 = vmatpush1.msra.mxu0 0.0
    %256 = vmatprep.subr.mxu0 0.0
    %257 = vmatpush1.msra.mxu0 0.0
    %258 = vmatprep.subr.mxu0 0.0
    %259 = vmatpush1.msra.mxu0 0.0
    %260 = vmatprep.subr.mxu0 0.0
    %261 = vmatpush1.msra.mxu0 0.0
    %262 = vmatprep.subr.mxu0 0.0
    %263 = vmatpush1.msra.mxu0 0.0
    %264 = vmatprep.subr.mxu0 0.0
    %265 = vmatpush1.msra.mxu0 0.0
    %266 = vmatprep.subr.mxu0 0.0
    %267 = vmatpush1.msra.mxu0 0.0
    %268 = vmatprep.subr.mxu0 0.0
    %269 = vmatpush1.msra.mxu0 0.0
    %270 = vmatprep.subr.mxu0 0.0
    %271 = vmatpush1.msra.mxu0 0.0
    %272 = vmatprep.subr.mxu0 0.0
    %273 = vmatpush1.msra.mxu0 0.0
    %274 = vmatprep.subr.mxu0 0.0
    %275 = vmatpush1.msra.mxu0 0.0
    %276 = vmatprep.subr.mxu0 0.0
    %277 = vmatpush1.msra.mxu0 0.0
    %278 = vmatprep.subr.mxu0 0.0
    %279 = vmatpush1.msra.mxu0 0.0
    %280 = vmatprep.mubr.f32.mxu0 0.0
    %v281 = vand.u32 %v17, 4294901760
    %282 = vmatmul.mubr.f32.gmra.mrb[0].mxu0 %v281
    %v283 = vpop.f32.mrb[0].mxu0
    %v284 = vadd.f32 %v123, %v283
    %v285 = vpop.f32.mrb[0].mxu0
    %286 = vmatprep.mubr.f32.mxu0 0.0
    %v287 = vand.u32 %v18, 4294901760
    %288 = vmatmul.mubr.f32.gmra.mrb[0].mxu0 %v287
    %v289 = vpop.f32.mrb[0].mxu0
    %v290 = vadd.f32 %v133, %v289
    %v291 = vpop.f32.mrb[0].mxu0
    %292 = vdwg.mxu0
    %293 = vmatprep.subr.mxu0 0.0
    %v294 = vand.u32 %v19, 4294901760
    %v295 = vsub.f32 %v19, %v294
    %296 = vmatpush1.msra.mxu0 %v295
    %297 = vmatprep.subr.mxu0 0.0
    %v298 = vand.u32 %v20, 4294901760
    %v299 = vsub.f32 %v20, %v298
    %300 = vmatpush1.msra.mxu0 %v299
    %301 = vmatprep.subr.mxu0 0.0
    %v302 = vand.u32 %v21, 4294901760
    %v303 = vsub.f32 %v21, %v302
    %304 = vmatpush1.msra.mxu0 %v303
    %305 = vmatprep.subr.mxu0 0.0
    %v306 = vand.u32 %v22, 4294901760
    %v307 = vsub.f32 %v22, %v306
    %308 = vmatpush1.msra.mxu0 %v307
    %309 = vmatprep.subr.mxu0 0.0
    %v310 = vand.u32 %v23, 4294901760
    %v311 = vsub.f32 %v23, %v310
    %312 = vmatpush1.msra.mxu0 %v311
    %313 = vmatprep.subr.mxu0 0.0
    %v314 = vand.u32 %v24, 4294901760
    %v315 = vsub.f32 %v24, %v314
    %316 = vmatpush1.msra.mxu0 %v315
    %317 = vmatprep.subr.mxu0 0.0
    %v318 = vand.u32 %v25, 4294901760
    %v319 = vsub.f32 %v25, %v318
    %320 = vmatpush1.msra.mxu0 %v319
    %321 = vmatprep.subr.mxu0 0.0
    %v322 = vand.u32 %v26, 4294901760
    %v323 = vsub.f32 %v26, %v322
    %324 = vmatpush1.msra.mxu0 %v323
    %325 = vmatprep.subr.mxu0 0.0
    %v326 = vand.u32 %v27, 4294901760
    %v327 = vsub.f32 %v27, %v326
    %328 = vmatpush1.msra.mxu0 %v327
    %329 = vmatprep.subr.mxu0 0.0
    %v330 = vand.u32 %v28, 4294901760
    %v331 = vsub.f32 %v28, %v330
    %332 = vmatpush1.msra.mxu0 %v331
    %333 = vmatprep.subr.mxu0 0.0
    %v334 = vand.u32 %v29, 4294901760
    %v335 = vsub.f32 %v29, %v334
    %336 = vmatpush1.msra.mxu0 %v335
    %337 = vmatprep.subr.mxu0 0.0
    %v338 = vand.u32 %v30, 4294901760
    %v339 = vsub.f32 %v30, %v338
    %340 = vmatpush1.msra.mxu0 %v339
    %341 = vmatprep.subr.mxu0 0.0
    %v342 = vand.u32 %v31, 4294901760
    %v343 = vsub.f32 %v31, %v342
    %344 = vmatpush1.msra.mxu0 %v343
    %345 = vmatprep.subr.mxu0 0.0
    %v346 = vand.u32 %v32, 4294901760
    %v347 = vsub.f32 %v32, %v346
    %348 = vmatpush1.msra.mxu0 %v347
    %349 = vmatprep.subr.mxu0 0.0
    %v350 = vand.u32 %v33, 4294901760
    %v351 = vsub.f32 %v33, %v350
    %352 = vmatpush1.msra.mxu0 %v351
    %353 = vmatprep.subr.mxu0 0.0
    %v354 = vand.u32 %v34, 4294901760
    %v355 = vsub.f32 %v34, %v354
    %356 = vmatpush1.msra.mxu0 %v355
    %357 = vmatprep.subr.mxu0 0.0
    %358 = vmatpush1.msra.mxu0 0.0
    %359 = vmatprep.subr.mxu0 0.0
    %360 = vmatpush1.msra.mxu0 0.0
    %361 = vmatprep.subr.mxu0 0.0
    %362 = vmatpush1.msra.mxu0 0.0
    %363 = vmatprep.subr.mxu0 0.0
    %364 = vmatpush1.msra.mxu0 0.0
    %365 = vmatprep.subr.mxu0 0.0
    %366 = vmatpush1.msra.mxu0 0.0
    %367 = vmatprep.subr.mxu0 0.0
    %368 = vmatpush1.msra.mxu0 0.0
    %369 = vmatprep.subr.mxu0 0.0
    %370 = vmatpush1.msra.mxu0 0.0
    %371 = vmatprep.subr.mxu0 0.0
    %372 = vmatpush1.msra.mxu0 0.0
    %373 = vmatprep.subr.mxu0 0.0
    %374 = vmatpush1.msra.mxu0 0.0
    %375 = vmatprep.subr.mxu0 0.0
    %376 = vmatpush1.msra.mxu0 0.0
    %377 = vmatprep.subr.mxu0 0.0
    %378 = vmatpush1.msra.mxu0 0.0
    %379 = vmatprep.subr.mxu0 0.0
    %380 = vmatpush1.msra.mxu0 0.0
    %381 = vmatprep.subr.mxu0 0.0
    %382 = vmatpush1.msra.mxu0 0.0
    %383 = vmatprep.subr.mxu0 0.0
    %384 = vmatpush1.msra.mxu0 0.0
    %385 = vmatprep.subr.mxu0 0.0
    %386 = vmatpush1.msra.mxu0 0.0
    %387 = vmatprep.subr.mxu0 0.0
    %388 = vmatpush1.msra.mxu0 0.0
    %389 = vmatprep.mubr.f32.mxu0 0.0
    %v390 = vand.u32 %v17, 4294901760
    %v391 = vsub.f32 %v17, %v390
    %392 = vmatmul.mubr.f32.gmra.mrb[0].mxu0 %v391
    %v393 = vpop.f32.mrb[0].mxu0
    %v394 = vadd.f32 %v284, %v393
    %v395 = vpop.f32.mrb[0].mxu0
    %396 = vmatprep.mubr.f32.mxu0 0.0
    %v397 = vand.u32 %v18, 4294901760
    %v398 = vsub.f32 %v18, %v397
    %399 = vmatmul.mubr.f32.gmra.mrb[0].mxu0 %v398
    %v400 = vpop.f32.mrb[0].mxu0
    %v401 = vadd.f32 %v290, %v400
    %v402 = vpop.f32.mrb[0].mxu0
    %403 = vdwg.mxu0
    %404 = vmatprep.subr.mxu0 0.0
    %v405 = vand.u32 %v19, 4294901760
    %406 = vmatpush1.msra.mxu0 %v405
    %407 = vmatprep.subr.mxu0 0.0
    %v408 = vand.u32 %v20, 4294901760
    %409 = vmatpush1.msra.mxu0 %v408
    %410 = vmatprep.subr.mxu0 0.0
    %v411 = vand.u32 %v21, 4294901760
    %412 = vmatpush1.msra.mxu0 %v411
    %413 = vmatprep.subr.mxu0 0.0
    %v414 = vand.u32 %v22, 4294901760
    %415 = vmatpush1.msra.mxu0 %v414
    %416 = vmatprep.subr.mxu0 0.0
    %v417 = vand.u32 %v23, 4294901760
    %418 = vmatpush1.msra.mxu0 %v417
    %419 = vmatprep.subr.mxu0 0.0
    %v420 = vand.u32 %v24, 4294901760
    %421 = vmatpush1.msra.mxu0 %v420
    %422 = vmatprep.subr.mxu0 0.0
    %v423 = vand.u32 %v25, 4294901760
    %424 = vmatpush1.msra.mxu0 %v423
    %425 = vmatprep.subr.mxu0 0.0
    %v426 = vand.u32 %v26, 4294901760
    %427 = vmatpush1.msra.mxu0 %v426
    %428 = vmatprep.subr.mxu0 0.0
    %v429 = vand.u32 %v27, 4294901760
    %430 = vmatpush1.msra.mxu0 %v429
    %431 = vmatprep.subr.mxu0 0.0
    %v432 = vand.u32 %v28, 4294901760
    %433 = vmatpush1.msra.mxu0 %v432
    %434 = vmatprep.subr.mxu0 0.0
    %v435 = vand.u32 %v29, 4294901760
    %436 = vmatpush1.msra.mxu0 %v435
    %437 = vmatprep.subr.mxu0 0.0
    %v438 = vand.u32 %v30, 4294901760
    %439 = vmatpush1.msra.mxu0 %v438
    %440 = vmatprep.subr.mxu0 0.0
    %v441 = vand.u32 %v31, 4294901760
    %442 = vmatpush1.msra.mxu0 %v441
    %443 = vmatprep.subr.mxu0 0.0
    %v444 = vand.u32 %v32, 4294901760
    %445 = vmatpush1.msra.mxu0 %v444
    %446 = vmatprep.subr.mxu0 0.0
    %v447 = vand.u32 %v33, 4294901760
    %448 = vmatpush1.msra.mxu0 %v447
    %449 = vmatprep.subr.mxu0 0.0
    %v450 = vand.u32 %v34, 4294901760
    %451 = vmatpush1.msra.mxu0 %v450
    %452 = vmatprep.subr.mxu0 0.0
    %453 = vmatpush1.msra.mxu0 0.0
    %454 = vmatprep.subr.mxu0 0.0
    %455 = vmatpush1.msra.mxu0 0.0
    %456 = vmatprep.subr.mxu0 0.0
    %457 = vmatpush1.msra.mxu0 0.0
    %458 = vmatprep.subr.mxu0 0.0
    %459 = vmatpush1.msra.mxu0 0.0
    %460 = vmatprep.subr.mxu0 0.0
    %461 = vmatpush1.msra.mxu0 0.0
    %462 = vmatprep.subr.mxu0 0.0
    %463 = vmatpush1.msra.mxu0 0.0
    %464 = vmatprep.subr.mxu0 0.0
    %465 = vmatpush1.msra.mxu0 0.0
    %466 = vmatprep.subr.mxu0 0.0
    %467 = vmatpush1.msra.mxu0 0.0
    %468 = vmatprep.subr.mxu0 0.0
    %469 = vmatpush1.msra.mxu0 0.0
    %470 = vmatprep.subr.mxu0 0.0
    %471 = vmatpush1.msra.mxu0 0.0
    %472 = vmatprep.subr.mxu0 0.0
    %473 = vmatpush1.msra.mxu0 0.0
    %474 = vmatprep.subr.mxu0 0.0
    %475 = vmatpush1.msra.mxu0 0.0
    %476 = vmatprep.subr.mxu0 0.0
    %477 = vmatpush1.msra.mxu0 0.0
    %478 = vmatprep.subr.mxu0 0.0
    %479 = vmatpush1.msra.mxu0 0.0
    %480 = vmatprep.subr.mxu0 0.0
    %481 = vmatpush1.msra.mxu0 0.0
    %482 = vmatprep.subr.mxu0 0.0
    %483 = vmatpush1.msra.mxu0 0.0
    %484 = vmatprep.mubr.f32.mxu0 0.0
    %v485 = vand.u32 %v17, 4294901760
    %v486 = vsub.f32 %v17, %v485
    %v487 = vand.u32 %v486, 4294901760
    %488 = vmatmul.mubr.f32.gmra.mrb[0].mxu0 %v487
    %v489 = vpop.f32.mrb[0].mxu0
    %v490 = vadd.f32 %v394, %v489
    %v491 = vpop.f32.mrb[0].mxu0
    %492 = vmatprep.mubr.f32.mxu0 0.0
    %v493 = vand.u32 %v18, 4294901760
    %v494 = vsub.f32 %v18, %v493
    %v495 = vand.u32 %v494, 4294901760
    %496 = vmatmul.mubr.f32.gmra.mrb[0].mxu0 %v495
    %v497 = vpop.f32.mrb[0].mxu0
    %v498 = vadd.f32 %v401, %v497
    %v499 = vpop.f32.mrb[0].mxu0
    %500 = vdwg.mxu0
    %501 = vmatprep.subr.mxu0 0.0
    %v502 = vand.u32 %v19, 4294901760
    %v503 = vsub.f32 %v19, %v502
    %v504 = vand.u32 %v503, 4294901760
    %505 = vmatpush1.msra.mxu0 %v504
    %506 = vmatprep.subr.mxu0 0.0
    %v507 = vand.u32 %v20, 4294901760
    %v508 = vsub.f32 %v20, %v507
    %v509 = vand.u32 %v508, 4294901760
    %510 = vmatpush1.msra.mxu0 %v509
    %511 = vmatprep.subr.mxu0 0.0
    %v512 = vand.u32 %v21, 4294901760
    %v513 = vsub.f32 %v21, %v512
    %v514 = vand.u32 %v513, 4294901760
    %515 = vmatpush1.msra.mxu0 %v514
    %516 = vmatprep.subr.mxu0 0.0
    %v517 = vand.u32 %v22, 4294901760
    %v518 = vsub.f32 %v22, %v517
    %v519 = vand.u32 %v518, 4294901760
    %520 = vmatpush1.msra.mxu0 %v519
    %521 = vmatprep.subr.mxu0 0.0
    %v522 = vand.u32 %v23, 4294901760
    %v523 = vsub.f32 %v23, %v522
    %v524 = vand.u32 %v523, 4294901760
    %525 = vmatpush1.msra.mxu0 %v524
    %526 = vmatprep.subr.mxu0 0.0
    %v527 = vand.u32 %v24, 4294901760
    %v528 = vsub.f32 %v24, %v527
    %v529 = vand.u32 %v528, 4294901760
    %530 = vmatpush1.msra.mxu0 %v529
    %531 = vmatprep.subr.mxu0 0.0
    %v532 = vand.u32 %v25, 4294901760
    %v533 = vsub.f32 %v25, %v532
    %v534 = vand.u32 %v533, 4294901760
    %535 = vmatpush1.msra.mxu0 %v534
    %536 = vmatprep.subr.mxu0 0.0
    %v537 = vand.u32 %v26, 4294901760
    %v538 = vsub.f32 %v26, %v537
    %v539 = vand.u32 %v538, 4294901760
    %540 = vmatpush1.msra.mxu0 %v539
    %541 = vmatprep.subr.mxu0 0.0
    %v542 = vand.u32 %v27, 4294901760
    %v543 = vsub.f32 %v27, %v542
    %v544 = vand.u32 %v543, 4294901760
    %545 = vmatpush1.msra.mxu0 %v544
    %546 = vmatprep.subr.mxu0 0.0
    %v547 = vand.u32 %v28, 4294901760
    %v548 = vsub.f32 %v28, %v547
    %v549 = vand.u32 %v548, 4294901760
    %550 = vmatpush1.msra.mxu0 %v549
    %551 = vmatprep.subr.mxu0 0.0
    %v552 = vand.u32 %v29, 4294901760
    %v553 = vsub.f32 %v29, %v552
    %v554 = vand.u32 %v553, 4294901760
    %555 = vmatpush1.msra.mxu0 %v554
    %556 = vmatprep.subr.mxu0 0.0
    %v557 = vand.u32 %v30, 4294901760
    %v558 = vsub.f32 %v30, %v557
    %v559 = vand.u32 %v558, 4294901760
    %560 = vmatpush1.msra.mxu0 %v559
    %561 = vmatprep.subr.mxu0 0.0
    %v562 = vand.u32 %v31, 4294901760
    %v563 = vsub.f32 %v31, %v562
    %v564 = vand.u32 %v563, 4294901760
    %565 = vmatpush1.msra.mxu0 %v564
    %566 = vmatprep.subr.mxu0 0.0
    %v567 = vand.u32 %v32, 4294901760
    %v568 = vsub.f32 %v32, %v567
    %v569 = vand.u32 %v568, 4294901760
    %570 = vmatpush1.msra.mxu0 %v569
    %571 = vmatprep.subr.mxu0 0.0
    %v572 = vand.u32 %v33, 4294901760
    %v573 = vsub.f32 %v33, %v572
    %v574 = vand.u32 %v573, 4294901760
    %575 = vmatpush1.msra.mxu0 %v574
    %576 = vmatprep.subr.mxu0 0.0
    %v577 = vand.u32 %v34, 4294901760
    %v578 = vsub.f32 %v34, %v577
    %v579 = vand.u32 %v578, 4294901760
    %580 = vmatpush1.msra.mxu0 %v579
    %581 = vmatprep.subr.mxu0 0.0
    %582 = vmatpush1.msra.mxu0 0.0
    %583 = vmatprep.subr.mxu0 0.0
    %584 = vmatpush1.msra.mxu0 0.0
    %585 = vmatprep.subr.mxu0 0.0
    %586 = vmatpush1.msra.mxu0 0.0
    %587 = vmatprep.subr.mxu0 0.0
    %588 = vmatpush1.msra.mxu0 0.0
    %589 = vmatprep.subr.mxu0 0.0
    %590 = vmatpush1.msra.mxu0 0.0
    %591 = vmatprep.subr.mxu0 0.0
    %592 = vmatpush1.msra.mxu0 0.0
    %593 = vmatprep.subr.mxu0 0.0
    %594 = vmatpush1.msra.mxu0 0.0
    %595 = vmatprep.subr.mxu0 0.0
    %596 = vmatpush1.msra.mxu0 0.0
    %597 = vmatprep.subr.mxu0 0.0
    %598 = vmatpush1.msra.mxu0 0.0
    %599 = vmatprep.subr.mxu0 0.0
    %600 = vmatpush1.msra.mxu0 0.0
    %601 = vmatprep.subr.mxu0 0.0
    %602 = vmatpush1.msra.mxu0 0.0
    %603 = vmatprep.subr.mxu0 0.0
    %604 = vmatpush1.msra.mxu0 0.0
    %605 = vmatprep.subr.mxu0 0.0
    %606 = vmatpush1.msra.mxu0 0.0
    %607 = vmatprep.subr.mxu0 0.0
    %608 = vmatpush1.msra.mxu0 0.0
    %609 = vmatprep.subr.mxu0 0.0
    %610 = vmatpush1.msra.mxu0 0.0
    %611 = vmatprep.subr.mxu0 0.0
    %612 = vmatpush1.msra.mxu0 0.0
    %613 = vmatprep.mubr.f32.mxu0 0.0
    %v614 = vand.u32 %v17, 4294901760
    %615 = vmatmul.mubr.f32.gmra.mrb[0].mxu0 %v614
    %v616 = vpop.f32.mrb[0].mxu0
    %v617 = vadd.f32 %v490, %v616
    %v618 = vpop.f32.mrb[0].mxu0
    %619 = vmatprep.mubr.f32.mxu0 0.0
    %v620 = vand.u32 %v18, 4294901760
    %621 = vmatmul.mubr.f32.gmra.mrb[0].mxu0 %v620
    %v622 = vpop.f32.mrb[0].mxu0
    %v623 = vadd.f32 %v498, %v622
    %v624 = vpop.f32.mrb[0].mxu0
    %625 = vdwg.mxu0
    %626 = vmatprep.subr.mxu0 0.0
    %v627 = vand.u32 %v19, 4294901760
    %628 = vmatpush1.msra.mxu0 %v627
    %629 = vmatprep.subr.mxu0 0.0
    %v630 = vand.u32 %v20, 4294901760
    %631 = vmatpush1.msra.mxu0 %v630
    %632 = vmatprep.subr.mxu0 0.0
    %v633 = vand.u32 %v21, 4294901760
    %634 = vmatpush1.msra.mxu0 %v633
    %635 = vmatprep.subr.mxu0 0.0
    %v636 = vand.u32 %v22, 4294901760
    %637 = vmatpush1.msra.mxu0 %v636
    %638 = vmatprep.subr.mxu0 0.0
    %v639 = vand.u32 %v23, 4294901760
    %640 = vmatpush1.msra.mxu0 %v639
    %641 = vmatprep.subr.mxu0 0.0
    %v642 = vand.u32 %v24, 4294901760
    %643 = vmatpush1.msra.mxu0 %v642
    %644 = vmatprep.subr.mxu0 0.0
    %v645 = vand.u32 %v25, 4294901760
    %646 = vmatpush1.msra.mxu0 %v645
    %647 = vmatprep.subr.mxu0 0.0
    %v648 = vand.u32 %v26, 4294901760
    %649 = vmatpush1.msra.mxu0 %v648
    %650 = vmatprep.subr.mxu0 0.0
    %v651 = vand.u32 %v27, 4294901760
    %652 = vmatpush1.msra.mxu0 %v651
    %653 = vmatprep.subr.mxu0 0.0
    %v654 = vand.u32 %v28, 4294901760
    %655 = vmatpush1.msra.mxu0 %v654
    %656 = vmatprep.subr.mxu0 0.0
    %v657 = vand.u32 %v29, 4294901760
    %658 = vmatpush1.msra.mxu0 %v657
    %659 = vmatprep.subr.mxu0 0.0
    %v660 = vand.u32 %v30, 4294901760
    %661 = vmatpush1.msra.mxu0 %v660
    %662 = vmatprep.subr.mxu0 0.0
    %v663 = vand.u32 %v31, 4294901760
    %664 = vmatpush1.msra.mxu0 %v663
    %665 = vmatprep.subr.mxu0 0.0
    %v666 = vand.u32 %v32, 4294901760
    %667 = vmatpush1.msra.mxu0 %v666
    %668 = vmatprep.subr.mxu0 0.0
    %v669 = vand.u32 %v33, 4294901760
    %670 = vmatpush1.msra.mxu0 %v669
    %671 = vmatprep.subr.mxu0 0.0
    %v672 = vand.u32 %v34, 4294901760
    %673 = vmatpush1.msra.mxu0 %v672
    %674 = vmatprep.subr.mxu0 0.0
    %675 = vmatpush1.msra.mxu0 0.0
    %676 = vmatprep.subr.mxu0 0.0
    %677 = vmatpush1.msra.mxu0 0.0
    %678 = vmatprep.subr.mxu0 0.0
    %679 = vmatpush1.msra.mxu0 0.0
    %680 = vmatprep.subr.mxu0 0.0
    %681 = vmatpush1.msra.mxu0 0.0
    %682 = vmatprep.subr.mxu0 0.0
    %683 = vmatpush1.msra.mxu0 0.0
    %684 = vmatprep.subr.mxu0 0.0
    %685 = vmatpush1.msra.mxu0 0.0
    %686 = vmatprep.subr.mxu0 0.0
    %687 = vmatpush1.msra.mxu0 0.0
    %688 = vmatprep.subr.mxu0 0.0
    %689 = vmatpush1.msra.mxu0 0.0
    %690 = vmatprep.subr.mxu0 0.0
    %691 = vmatpush1.msra.mxu0 0.0
    %692 = vmatprep.subr.mxu0 0.0
    %693 = vmatpush1.msra.mxu0 0.0
    %694 = vmatprep.subr.mxu0 0.0
    %695 = vmatpush1.msra.mxu0 0.0
    %696 = vmatprep.subr.mxu0 0.0
    %697 = vmatpush1.msra.mxu0 0.0
    %698 = vmatprep.subr.mxu0 0.0
    %699 = vmatpush1.msra.mxu0 0.0
    %700 = vmatprep.subr.mxu0 0.0
    %701 = vmatpush1.msra.mxu0 0.0
    %702 = vmatprep.subr.mxu0 0.0
    %703 = vmatpush1.msra.mxu0 0.0
    %704 = vmatprep.subr.mxu0 0.0
    %705 = vmatpush1.msra.mxu0 0.0
    %706 = vmatprep.mubr.f32.mxu0 0.0
    %v707 = vand.u32 %v17, 4294901760
    %708 = vmatmul.mubr.f32.gmra.mrb[0].mxu0 %v707
    %v709 = vpop.f32.mrb[0].mxu0
    %v710 = vadd.f32 %v617, %v709
    %v711 = vpop.f32.mrb[0].mxu0
    %712 = vmatprep.mubr.f32.mxu0 0.0
    %v713 = vand.u32 %v18, 4294901760
    %714 = vmatmul.mubr.f32.gmra.mrb[0].mxu0 %v713
    %v715 = vpop.f32.mrb[0].mxu0
    %v716 = vadd.f32 %v623, %v715
    %v717 = vpop.f32.mrb[0].mxu0
    %718 = vdwg.mxu0
    %v719 = vmul.f32 %v710, 0.03125
    %v720 = vmul.f32 %v716, 0.03125
    %v721 = vadd.f32 %v719, 1e-05
    %v722 = vadd.f32 %v720, 1e-05
    %v723 = vrsqrt.pop %v721
    %v724 = vrsqrt.pop %v722
    %v725 = vld [vmem:[%s2] sm:$0xff]
    %vm726 = vcmask 64512
    %v728 = vsel %vm726, %v723, 0
    %v731 = vsel %vm726, %v724, 0
    %733 = vmatprep.subr.mxu0 0.0
    %v734 = vand.u32 %v725, 4294901760
    %735 = vmatpush1.msra.mxu0 %v734
    %736 = vmatprep.subr.mxu0 0.0
    %737 = vmatpush1.msra.mxu0 0.0
    %738 = vmatprep.subr.mxu0 0.0
    %739 = vmatpush1.msra.mxu0 0.0
    %740 = vmatprep.subr.mxu0 0.0
    %741 = vmatpush1.msra.mxu0 0.0
    %742 = vmatprep.subr.mxu0 0.0
    %743 = vmatpush1.msra.mxu0 0.0
    %744 = vmatprep.subr.mxu0 0.0
    %745 = vmatpush1.msra.mxu0 0.0
    %746 = vmatprep.subr.mxu0 0.0
    %747 = vmatpush1.msra.mxu0 0.0
    %748 = vmatprep.subr.mxu0 0.0
    %749 = vmatpush1.msra.mxu0 0.0
    %750 = vmatprep.subr.mxu0 0.0
    %751 = vmatpush1.msra.mxu0 0.0
    %752 = vmatprep.subr.mxu0 0.0
    %753 = vmatpush1.msra.mxu0 0.0
    %754 = vmatprep.subr.mxu0 0.0
    %755 = vmatpush1.msra.mxu0 0.0
    %756 = vmatprep.subr.mxu0 0.0
    %757 = vmatpush1.msra.mxu0 0.0
    %758 = vmatprep.subr.mxu0 0.0
    %759 = vmatpush1.msra.mxu0 0.0
    %760 = vmatprep.subr.mxu0 0.0
    %761 = vmatpush1.msra.mxu0 0.0
    %762 = vmatprep.subr.mxu0 0.0
    %763 = vmatpush1.msra.mxu0 0.0
    %764 = vmatprep.subr.mxu0 0.0
    %765 = vmatpush1.msra.mxu0 0.0
    %766 = vmatprep.subr.mxu0 0.0
    %767 = vmatpush1.msra.mxu0 0.0
    %768 = vmatprep.subr.mxu0 0.0
    %769 = vmatpush1.msra.mxu0 0.0
    %770 = vmatprep.subr.mxu0 0.0
    %771 = vmatpush1.msra.mxu0 0.0
    %772 = vmatprep.subr.mxu0 0.0
    %773 = vmatpush1.msra.mxu0 0.0
    %774 = vmatprep.subr.mxu0 0.0
    %775 = vmatpush1.msra.mxu0 0.0
    %776 = vmatprep.subr.mxu0 0.0
    %777 = vmatpush1.msra.mxu0 0.0
    %778 = vmatprep.subr.mxu0 0.0
    %779 = vmatpush1.msra.mxu0 0.0
    %780 = vmatprep.subr.mxu0 0.0
    %781 = vmatpush1.msra.mxu0 0.0
    %782 = vmatprep.subr.mxu0 0.0
    %783 = vmatpush1.msra.mxu0 0.0
    %784 = vmatprep.subr.mxu0 0.0
    %785 = vmatpush1.msra.mxu0 0.0
    %786 = vmatprep.subr.mxu0 0.0
    %787 = vmatpush1.msra.mxu0 0.0
    %788 = vmatprep.subr.mxu0 0.0
    %789 = vmatpush1.msra.mxu0 0.0
    %790 = vmatprep.subr.mxu0 0.0
    %791 = vmatpush1.msra.mxu0 0.0
    %792 = vmatprep.subr.mxu0 0.0
    %793 = vmatpush1.msra.mxu0 0.0
    %794 = vmatprep.subr.mxu0 0.0
    %795 = vmatpush1.msra.mxu0 0.0
    %796 = vmatprep.subr.mxu0 0.0
    %797 = vmatpush1.msra.mxu0 0.0
    %798 = vmatprep.mubr.f32.mxu0 0.0
    %v799 = vand.u32 %v728, 4294901760
    %v800 = vsub.f32 %v728, %v799
    %v801 = vand.u32 %v800, 4294901760
    %v802 = vsub.f32 %v800, %v801
    %v803 = vand.u32 %v802, 4294901760
    %804 = vmatmul.mubr.f32.gmra.mrb[0].mxu0 %v803
    %v805 = vpop.f32.mrb[0].mxu0
    %v806 = vadd.f32 0.0, %v805
    %v807 = vpop.f32.mrb[0].mxu0
    %808 = vmatprep.mubr.f32.mxu0 0.0
    %v809 = vand.u32 %v731, 4294901760
    %v810 = vsub.f32 %v731, %v809
    %v811 = vand.u32 %v810, 4294901760
    %v812 = vsub.f32 %v810, %v811
    %v813 = vand.u32 %v812, 4294901760
    %814 = vmatmul.mubr.f32.gmra.mrb[0].mxu0 %v813
    %v815 = vpop.f32.mrb[0].mxu0
    %v816 = vadd.f32 0.0, %v815
    %v817 = vpop.f32.mrb[0].mxu0
    %818 = vdwg.mxu0
    %819 = vmatprep.subr.mxu0 0.0
    %v820 = vand.u32 %v725, 4294901760
    %v821 = vsub.f32 %v725, %v820
    %v822 = vand.u32 %v821, 4294901760
    %v823 = vsub.f32 %v821, %v822
    %v824 = vand.u32 %v823, 4294901760
    %825 = vmatpush1.msra.mxu0 %v824
    %826 = vmatprep.subr.mxu0 0.0
    %827 = vmatpush1.msra.mxu0 0.0
    %828 = vmatprep.subr.mxu0 0.0
    %829 = vmatpush1.msra.mxu0 0.0
    %830 = vmatprep.subr.mxu0 0.0
    %831 = vmatpush1.msra.mxu0 0.0
    %832 = vmatprep.subr.mxu0 0.0
    %833 = vmatpush1.msra.mxu0 0.0
    %834 = vmatprep.subr.mxu0 0.0
    %835 = vmatpush1.msra.mxu0 0.0
    %836 = vmatprep.subr.mxu0 0.0
    %837 = vmatpush1.msra.mxu0 0.0
    %838 = vmatprep.subr.mxu0 0.0
    %839 = vmatpush1.msra.mxu0 0.0
    %840 = vmatprep.subr.mxu0 0.0
    %841 = vmatpush1.msra.mxu0 0.0
    %842 = vmatprep.subr.mxu0 0.0
    %843 = vmatpush1.msra.mxu0 0.0
    %844 = vmatprep.subr.mxu0 0.0
    %845 = vmatpush1.msra.mxu0 0.0
    %846 = vmatprep.subr.mxu0 0.0
    %847 = vmatpush1.msra.mxu0 0.0
    %848 = vmatprep.subr.mxu0 0.0
    %849 = vmatpush1.msra.mxu0 0.0
    %850 = vmatprep.subr.mxu0 0.0
    %851 = vmatpush1.msra.mxu0 0.0
    %852 = vmatprep.subr.mxu0 0.0
    %853 = vmatpush1.msra.mxu0 0.0
    %854 = vmatprep.subr.mxu0 0.0
    %855 = vmatpush1.msra.mxu0 0.0
    %856 = vmatprep.subr.mxu0 0.0
    %857 = vmatpush1.msra.mxu0 0.0
    %858 = vmatprep.subr.mxu0 0.0
    %859 = vmatpush1.msra.mxu0 0.0
    %860 = vmatprep.subr.mxu0 0.0
    %861 = vmatpush1.msra.mxu0 0.0
    %862 = vmatprep.subr.mxu0 0.0
    %863 = vmatpush1.msra.mxu0 0.0
    %864 = vmatprep.subr.mxu0 0.0
    %865 = vmatpush1.msra.mxu0 0.0
    %866 = vmatprep.subr.mxu0 0.0
    %867 = vmatpush1.msra.mxu0 0.0
    %868 = vmatprep.subr.mxu0 0.0
    %869 = vmatpush1.msra.mxu0 0.0
    %870 = vmatprep.subr.mxu0 0.0
    %871 = vmatpush1.msra.mxu0 0.0
    %872 = vmatprep.subr.mxu0 0.0
    %873 = vmatpush1.msra.mxu0 0.0
    %874 = vmatprep.subr.mxu0 0.0
    %875 = vmatpush1.msra.mxu0 0.0
    %876 = vmatprep.subr.mxu0 0.0
    %877 = vmatpush1.msra.mxu0 0.0
    %878 = vmatprep.subr.mxu0 0.0
    %879 = vmatpush1.msra.mxu0 0.0
    %880 = vmatprep.subr.mxu0 0.0
    %881 = vmatpush1.msra.mxu0 0.0
    %882 = vmatprep.subr.mxu0 0.0
    %883 = vmatpush1.msra.mxu0 0.0
    %884 = vmatprep.subr.mxu0 0.0
    %885 = vmatpush1.msra.mxu0 0.0
    %886 = vmatprep.subr.mxu0 0.0
    %887 = vmatpush1.msra.mxu0 0.0
    %888 = vmatprep.mubr.f32.mxu0 0.0
    %v889 = vand.u32 %v728, 4294901760
    %890 = vmatmul.mubr.f32.gmra.mrb[0].mxu0 %v889
    %v891 = vpop.f32.mrb[0].mxu0
    %v892 = vadd.f32 %v806, %v891
    %v893 = vpop.f32.mrb[0].mxu0
    %894 = vmatprep.mubr.f32.mxu0 0.0
    %v895 = vand.u32 %v731, 4294901760
    %896 = vmatmul.mubr.f32.gmra.mrb[0].mxu0 %v895
    %v897 = vpop.f32.mrb[0].mxu0
    %v898 = vadd.f32 %v816, %v897
    %v899 = vpop.f32.mrb[0].mxu0
    %900 = vdwg.mxu0
    %901 = vmatprep.subr.mxu0 0.0
    %v902 = vand.u32 %v725, 4294901760
    %v903 = vsub.f32 %v725, %v902
    %904 = vmatpush1.msra.mxu0 %v903
    %905 = vmatprep.subr.mxu0 0.0
    %906 = vmatpush1.msra.mxu0 0.0
    %907 = vmatprep.subr.mxu0 0.0
    %908 = vmatpush1.msra.mxu0 0.0
    %909 = vmatprep.subr.mxu0 0.0
    %910 = vmatpush1.msra.mxu0 0.0
    %911 = vmatprep.subr.mxu0 0.0
    %912 = vmatpush1.msra.mxu0 0.0
    %913 = vmatprep.subr.mxu0 0.0
    %914 = vmatpush1.msra.mxu0 0.0
    %915 = vmatprep.subr.mxu0 0.0
    %916 = vmatpush1.msra.mxu0 0.0
    %917 = vmatprep.subr.mxu0 0.0
    %918 = vmatpush1.msra.mxu0 0.0
    %919 = vmatprep.subr.mxu0 0.0
    %920 = vmatpush1.msra.mxu0 0.0
    %921 = vmatprep.subr.mxu0 0.0
    %922 = vmatpush1.msra.mxu0 0.0
    %923 = vmatprep.subr.mxu0 0.0
    %924 = vmatpush1.msra.mxu0 0.0
    %925 = vmatprep.subr.mxu0 0.0
    %926 = vmatpush1.msra.mxu0 0.0
    %927 = vmatprep.subr.mxu0 0.0
    %928 = vmatpush1.msra.mxu0 0.0
    %929 = vmatprep.subr.mxu0 0.0
    %930 = vmatpush1.msra.mxu0 0.0
    %931 = vmatprep.subr.mxu0 0.0
    %932 = vmatpush1.msra.mxu0 0.0
    %933 = vmatprep.subr.mxu0 0.0
    %934 = vmatpush1.msra.mxu0 0.0
    %935 = vmatprep.subr.mxu0 0.0
    %936 = vmatpush1.msra.mxu0 0.0
    %937 = vmatprep.subr.mxu0 0.0
    %938 = vmatpush1.msra.mxu0 0.0
    %939 = vmatprep.subr.mxu0 0.0
    %940 = vmatpush1.msra.mxu0 0.0
    %941 = vmatprep.subr.mxu0 0.0
    %942 = vmatpush1.msra.mxu0 0.0
    %943 = vmatprep.subr.mxu0 0.0
    %944 = vmatpush1.msra.mxu0 0.0
    %945 = vmatprep.subr.mxu0 0.0
    %946 = vmatpush1.msra.mxu0 0.0
    %947 = vmatprep.subr.mxu0 0.0
    %948 = vmatpush1.msra.mxu0 0.0
    %949 = vmatprep.subr.mxu0 0.0
    %950 = vmatpush1.msra.mxu0 0.0
    %951 = vmatprep.subr.mxu0 0.0
    %952 = vmatpush1.msra.mxu0 0.0
    %953 = vmatprep.subr.mxu0 0.0
    %954 = vmatpush1.msra.mxu0 0.0
    %955 = vmatprep.subr.mxu0 0.0
    %956 = vmatpush1.msra.mxu0 0.0
    %957 = vmatprep.subr.mxu0 0.0
    %958 = vmatpush1.msra.mxu0 0.0
    %959 = vmatprep.subr.mxu0 0.0
    %960 = vmatpush1.msra.mxu0 0.0
    %961 = vmatprep.subr.mxu0 0.0
    %962 = vmatpush1.msra.mxu0 0.0
    %963 = vmatprep.subr.mxu0 0.0
    %964 = vmatpush1.msra.mxu0 0.0
    %965 = vmatprep.subr.mxu0 0.0
    %966 = vmatpush1.msra.mxu0 0.0
    %967 = vmatprep.mubr.f32.mxu0 0.0
    %v968 = vand.u32 %v728, 4294901760
    %v969 = vsub.f32 %v728, %v968
    %970 = vmatmul.mubr.f32.gmra.mrb[0].mxu0 %v969
    %v971 = vpop.f32.mrb[0].mxu0
    %v972 = vadd.f32 %v892, %v971
    %v973 = vpop.f32.mrb[0].mxu0
    %974 = vmatprep.mubr.f32.mxu0 0.0
    %v975 = vand.u32 %v731, 4294901760
    %v976 = vsub.f32 %v731, %v975
    %977 = vmatmul.mubr.f32.gmra.mrb[0].mxu0 %v976
    %v978 = vpop.f32.mrb[0].mxu0
    %v979 = vadd.f32 %v898, %v978
    %v980 = vpop.f32.mrb[0].mxu0
    %981 = vdwg.mxu0
    %982 = vmatprep.subr.mxu0 0.0
    %v983 = vand.u32 %v725, 4294901760
    %984 = vmatpush1.msra.mxu0 %v983
    %985 = vmatprep.subr.mxu0 0.0
    %986 = vmatpush1.msra.mxu0 0.0
    %987 = vmatprep.subr.mxu0 0.0
    %988 = vmatpush1.msra.mxu0 0.0
    %989 = vmatprep.subr.mxu0 0.0
    %990 = vmatpush1.msra.mxu0 0.0
    %991 = vmatprep.subr.mxu0 0.0
    %992 = vmatpush1.msra.mxu0 0.0
    %993 = vmatprep.subr.mxu0 0.0
    %994 = vmatpush1.msra.mxu0 0.0
    %995 = vmatprep.subr.mxu0 0.0
    %996 = vmatpush1.msra.mxu0 0.0
    %997 = vmatprep.subr.mxu0 0.0
    %998 = vmatpush1.msra.mxu0 0.0
    %999 = vmatprep.subr.mxu0 0.0
    %1000 = vmatpush1.msra.mxu0 0.0
    %1001 = vmatprep.subr.mxu0 0.0
    %1002 = vmatpush1.msra.mxu0 0.0
    %1003 = vmatprep.subr.mxu0 0.0
    %1004 = vmatpush1.msra.mxu0 0.0
    %1005 = vmatprep.subr.mxu0 0.0
    %1006 = vmatpush1.msra.mxu0 0.0
    %1007 = vmatprep.subr.mxu0 0.0
    %1008 = vmatpush1.msra.mxu0 0.0
    %1009 = vmatprep.subr.mxu0 0.0
    %1010 = vmatpush1.msra.mxu0 0.0
    %1011 = vmatprep.subr.mxu0 0.0
    %1012 = vmatpush1.msra.mxu0 0.0
    %1013 = vmatprep.subr.mxu0 0.0
    %1014 = vmatpush1.msra.mxu0 0.0
    %1015 = vmatprep.subr.mxu0 0.0
    %1016 = vmatpush1.msra.mxu0 0.0
    %1017 = vmatprep.subr.mxu0 0.0
    %1018 = vmatpush1.msra.mxu0 0.0
    %1019 = vmatprep.subr.mxu0 0.0
    %1020 = vmatpush1.msra.mxu0 0.0
    %1021 = vmatprep.subr.mxu0 0.0
    %1022 = vmatpush1.msra.mxu0 0.0
    %1023 = vmatprep.subr.mxu0 0.0
    %1024 = vmatpush1.msra.mxu0 0.0
    %1025 = vmatprep.subr.mxu0 0.0
    %1026 = vmatpush1.msra.mxu0 0.0
    %1027 = vmatprep.subr.mxu0 0.0
    %1028 = vmatpush1.msra.mxu0 0.0
    %1029 = vmatprep.subr.mxu0 0.0
    %1030 = vmatpush1.msra.mxu0 0.0
    %1031 = vmatprep.subr.mxu0 0.0
    %1032 = vmatpush1.msra.mxu0 0.0
    %1033 = vmatprep.subr.mxu0 0.0
    %1034 = vmatpush1.msra.mxu0 0.0
    %1035 = vmatprep.subr.mxu0 0.0
    %1036 = vmatpush1.msra.mxu0 0.0
    %1037 = vmatprep.subr.mxu0 0.0
    %1038 = vmatpush1.msra.mxu0 0.0
    %1039 = vmatprep.subr.mxu0 0.0
    %1040 = vmatpush1.msra.mxu0 0.0
    %1041 = vmatprep.subr.mxu0 0.0
    %1042 = vmatpush1.msra.mxu0 0.0
    %1043 = vmatprep.subr.mxu0 0.0
    %1044 = vmatpush1.msra.mxu0 0.0
    %1045 = vmatprep.subr.mxu0 0.0
    %1046 = vmatpush1.msra.mxu0 0.0
    %1047 = vmatprep.mubr.f32.mxu0 0.0
    %v1048 = vand.u32 %v728, 4294901760
    %v1049 = vsub.f32 %v728, %v1048
    %v1050 = vand.u32 %v1049, 4294901760
    %1051 = vmatmul.mubr.f32.gmra.mrb[0].mxu0 %v1050
    %v1052 = vpop.f32.mrb[0].mxu0
    %v1053 = vadd.f32 %v972, %v1052
    %v1054 = vpop.f32.mrb[0].mxu0
    %1055 = vmatprep.mubr.f32.mxu0 0.0
    %v1056 = vand.u32 %v731, 4294901760
    %v1057 = vsub.f32 %v731, %v1056
    %v1058 = vand.u32 %v1057, 4294901760
    %1059 = vmatmul.mubr.f32.gmra.mrb[0].mxu0 %v1058
    %v1060 = vpop.f32.mrb[0].mxu0
    %v1061 = vadd.f32 %v979, %v1060
    %v1062 = vpop.f32.mrb[0].mxu0
    %1063 = vdwg.mxu0
    %1064 = vmatprep.subr.mxu0 0.0
    %v1065 = vand.u32 %v725, 4294901760
    %v1066 = vsub.f32 %v725, %v1065
    %v1067 = vand.u32 %v1066, 4294901760
    %1068 = vmatpush1.msra.mxu0 %v1067
    %1069 = vmatprep.subr.mxu0 0.0
    %1070 = vmatpush1.msra.mxu0 0.0
    %1071 = vmatprep.subr.mxu0 0.0
    %1072 = vmatpush1.msra.mxu0 0.0
    %1073 = vmatprep.subr.mxu0 0.0
    %1074 = vmatpush1.msra.mxu0 0.0
    %1075 = vmatprep.subr.mxu0 0.0
    %1076 = vmatpush1.msra.mxu0 0.0
    %1077 = vmatprep.subr.mxu0 0.0
    %1078 = vmatpush1.msra.mxu0 0.0
    %1079 = vmatprep.subr.mxu0 0.0
    %1080 = vmatpush1.msra.mxu0 0.0
    %1081 = vmatprep.subr.mxu0 0.0
    %1082 = vmatpush1.msra.mxu0 0.0
    %1083 = vmatprep.subr.mxu0 0.0
    %1084 = vmatpush1.msra.mxu0 0.0
    %1085 = vmatprep.subr.mxu0 0.0
    %1086 = vmatpush1.msra.mxu0 0.0
    %1087 = vmatprep.subr.mxu0 0.0
    %1088 = vmatpush1.msra.mxu0 0.0
    %1089 = vmatprep.subr.mxu0 0.0
    %1090 = vmatpush1.msra.mxu0 0.0
    %1091 = vmatprep.subr.mxu0 0.0
    %1092 = vmatpush1.msra.mxu0 0.0
    %1093 = vmatprep.subr.mxu0 0.0
    %1094 = vmatpush1.msra.mxu0 0.0
    %1095 = vmatprep.subr.mxu0 0.0
    %1096 = vmatpush1.msra.mxu0 0.0
    %1097 = vmatprep.subr.mxu0 0.0
    %1098 = vmatpush1.msra.mxu0 0.0
    %1099 = vmatprep.subr.mxu0 0.0
    %1100 = vmatpush1.msra.mxu0 0.0
    %1101 = vmatprep.subr.mxu0 0.0
    %1102 = vmatpush1.msra.mxu0 0.0
    %1103 = vmatprep.subr.mxu0 0.0
    %1104 = vmatpush1.msra.mxu0 0.0
    %1105 = vmatprep.subr.mxu0 0.0
    %1106 = vmatpush1.msra.mxu0 0.0
    %1107 = vmatprep.subr.mxu0 0.0
    %1108 = vmatpush1.msra.mxu0 0.0
    %1109 = vmatprep.subr.mxu0 0.0
    %1110 = vmatpush1.msra.mxu0 0.0
    %1111 = vmatprep.subr.mxu0 0.0
    %1112 = vmatpush1.msra.mxu0 0.0
    %1113 = vmatprep.subr.mxu0 0.0
    %1114 = vmatpush1.msra.mxu0 0.0
    %1115 = vmatprep.subr.mxu0 0.0
    %1116 = vmatpush1.msra.mxu0 0.0
    %1117 = vmatprep.subr.mxu0 0.0
    %1118 = vmatpush1.msra.mxu0 0.0
    %1119 = vmatprep.subr.mxu0 0.0
    %1120 = vmatpush1.msra.mxu0 0.0
    %1121 = vmatprep.subr.mxu0 0.0
    %1122 = vmatpush1.msra.mxu0 0.0
    %1123 = vmatprep.subr.mxu0 0.0
    %1124 = vmatpush1.msra.mxu0 0.0
    %1125 = vmatprep.subr.mxu0 0.0
    %1126 = vmatpush1.msra.mxu0 0.0
    %1127 = vmatprep.subr.mxu0 0.0
    %1128 = vmatpush1.msra.mxu0 0.0
    %1129 = vmatprep.subr.mxu0 0.0
    %1130 = vmatpush1.msra.mxu0 0.0
    %1131 = vmatprep.mubr.f32.mxu0 0.0
    %v1132 = vand.u32 %v728, 4294901760
    %1133 = vmatmul.mubr.f32.gmra.mrb[0].mxu0 %v1132
    %v1134 = vpop.f32.mrb[0].mxu0
    %v1135 = vadd.f32 %v1053, %v1134
    %v1136 = vpop.f32.mrb[0].mxu0
    %1137 = vmatprep.mubr.f32.mxu0 0.0
    %v1138 = vand.u32 %v731, 4294901760
    %1139 = vmatmul.mubr.f32.gmra.mrb[0].mxu0 %v1138
    %v1140 = vpop.f32.mrb[0].mxu0
    %v1141 = vadd.f32 %v1061, %v1140
    %v1142 = vpop.f32.mrb[0].mxu0
    %1143 = vdwg.mxu0
    %1144 = vmatprep.subr.mxu0 0.0
    %v1145 = vand.u32 %v725, 4294901760
    %1146 = vmatpush1.msra.mxu0 %v1145
    %1147 = vmatprep.subr.mxu0 0.0
    %1148 = vmatpush1.msra.mxu0 0.0
    %1149 = vmatprep.subr.mxu0 0.0
    %1150 = vmatpush1.msra.mxu0 0.0
    %1151 = vmatprep.subr.mxu0 0.0
    %1152 = vmatpush1.msra.mxu0 0.0
    %1153 = vmatprep.subr.mxu0 0.0
    %1154 = vmatpush1.msra.mxu0 0.0
    %1155 = vmatprep.subr.mxu0 0.0
    %1156 = vmatpush1.msra.mxu0 0.0
    %1157 = vmatprep.subr.mxu0 0.0
    %1158 = vmatpush1.msra.mxu0 0.0
    %1159 = vmatprep.subr.mxu0 0.0
    %1160 = vmatpush1.msra.mxu0 0.0
    %1161 = vmatprep.subr.mxu0 0.0
    %1162 = vmatpush1.msra.mxu0 0.0
    %1163 = vmatprep.subr.mxu0 0.0
    %1164 = vmatpush1.msra.mxu0 0.0
    %1165 = vmatprep.subr.mxu0 0.0
    %1166 = vmatpush1.msra.mxu0 0.0
    %1167 = vmatprep.subr.mxu0 0.0
    %1168 = vmatpush1.msra.mxu0 0.0
    %1169 = vmatprep.subr.mxu0 0.0
    %1170 = vmatpush1.msra.mxu0 0.0
    %1171 = vmatprep.subr.mxu0 0.0
    %1172 = vmatpush1.msra.mxu0 0.0
    %1173 = vmatprep.subr.mxu0 0.0
    %1174 = vmatpush1.msra.mxu0 0.0
    %1175 = vmatprep.subr.mxu0 0.0
    %1176 = vmatpush1.msra.mxu0 0.0
    %1177 = vmatprep.subr.mxu0 0.0
    %1178 = vmatpush1.msra.mxu0 0.0
    %1179 = vmatprep.subr.mxu0 0.0
    %1180 = vmatpush1.msra.mxu0 0.0
    %1181 = vmatprep.subr.mxu0 0.0
    %1182 = vmatpush1.msra.mxu0 0.0
    %1183 = vmatprep.subr.mxu0 0.0
    %1184 = vmatpush1.msra.mxu0 0.0
    %1185 = vmatprep.subr.mxu0 0.0
    %1186 = vmatpush1.msra.mxu0 0.0
    %1187 = vmatprep.subr.mxu0 0.0
    %1188 = vmatpush1.msra.mxu0 0.0
    %1189 = vmatprep.subr.mxu0 0.0
    %1190 = vmatpush1.msra.mxu0 0.0
    %1191 = vmatprep.subr.mxu0 0.0
    %1192 = vmatpush1.msra.mxu0 0.0
    %1193 = vmatprep.subr.mxu0 0.0
    %1194 = vmatpush1.msra.mxu0 0.0
    %1195 = vmatprep.subr.mxu0 0.0
    %1196 = vmatpush1.msra.mxu0 0.0
    %1197 = vmatprep.subr.mxu0 0.0
    %1198 = vmatpush1.msra.mxu0 0.0
    %1199 = vmatprep.subr.mxu0 0.0
    %1200 = vmatpush1.msra.mxu0 0.0
    %1201 = vmatprep.subr.mxu0 0.0
    %1202 = vmatpush1.msra.mxu0 0.0
    %1203 = vmatprep.subr.mxu0 0.0
    %1204 = vmatpush1.msra.mxu0 0.0
    %1205 = vmatprep.subr.mxu0 0.0
    %1206 = vmatpush1.msra.mxu0 0.0
    %1207 = vmatprep.subr.mxu0 0.0
    %1208 = vmatpush1.msra.mxu0 0.0
    %1209 = vmatprep.mubr.f32.mxu0 0.0
    %v1210 = vand.u32 %v728, 4294901760
    %1211 = vmatmul.mubr.f32.gmra.mrb[0].mxu0 %v1210
    %v1212 = vpop.f32.mrb[0].mxu0
    %v1213 = vadd.f32 %v1135, %v1212
    %v1214 = vpop.f32.mrb[0].mxu0
    %1215 = vmatprep.mubr.f32.mxu0 0.0
    %v1216 = vand.u32 %v731, 4294901760
    %1217 = vmatmul.mubr.f32.gmra.mrb[0].mxu0 %v1216
    %v1218 = vpop.f32.mrb[0].mxu0
    %v1219 = vadd.f32 %v1141, %v1218
    %v1220 = vpop.f32.mrb[0].mxu0
    %1221 = vdwg.mxu0
    %v1222 = vmul.f32 %v15, %v1213
    %v1223 = vmul.f32 %v16, %v1219
    %1224 = vst [vmem:[#allocation2] sm:$0xff] %v1222
    %1225 = vst [vmem:[#allocation2 + $0x8] sm:$0xff] %v1223
    // Predicated region
    $region14: #{tpu_custom_call.1} parent=1 // pred_check
      _
    $region15: #{tpu_custom_call.1} parent=1 // pred_check_branch
      %1227 = sbr.rel (0) target = $region17
    $region16: #{tpu_custom_call.1} parent=1 // pred_region
      %s1229 = ssub.s32 256, 256
      %1230 = vsyncadd [#allocation3], %s1229
      %s1231 = sshll.u32 [#allocation2], 4
      %s1232 = int_to_ptr.vmem [resolvable:$true] %s1231
      %1237 = dma.vmem_to_hbm [thread:$0]  %s1232, 256, %s3, [#allocation3], 128, 128, 8
    $region17: #{tpu_custom_call.1} parent=1 // pred_fallthru
      _
    // Predicated region
    $region18: #{tpu_custom_call.1} parent=1 // pred_check
      _
    $region19: #{tpu_custom_call.1} parent=1 // pred_check_branch
      %1239 = sbr.rel (0) target = $region21
    $region20: #{tpu_custom_call.1} parent=1 // pred_region
      %1240 = dma.done [#allocation3], 256
    $region21: #{tpu_custom_call.1} parent=1 // pred_fallthru
      _
    %1241 = vsyncpa [#allocation3], 1

</llo_original>
